<compile_context>
chip_gen: v5e
topology: v5e:2x2
jax: 0.10.0
libtpu: 0.0.40
codegen_flags: <defaults>
</compile_context>

<pallas_src>
import jax
import jax.numpy as jnp
from jax.experimental import pallas as pl
from jax.experimental.pallas import tpu as pltpu

VOCAB_SIZE = 5000


def _round_up(x, m):
    return (x + m - 1) // m * m


def _make_gather_kernel(tn, n_slots):
    """Build a kernel gathering `tn` table rows per grid step with an
    `n_slots`-deep pipeline of row DMAs."""

    def kernel(ids_ref, table_ref, out_ref, sems):
        # ids_ref:   SMEM (N_pad,) int32         (scalar prefetch)
        # table_ref: HBM  (V_rows, V) float32    (memory_space=pl.ANY, manual DMA)
        # out_ref:   VMEM (tn, V) float32        (current output row-block)
        # sems:      DMA semaphores (n_slots,)
        base = pl.program_id(0) * tn

        def issue(j, tok):
            # Copy table row `tok` into local output row `j`.
            pltpu.make_async_copy(
                table_ref.at[pl.ds(tok, 1), :],
                out_ref.at[pl.ds(j, 1), :],
                sems.at[j % n_slots],
            ).start()

        def wait_slot(slot):
            # Same-shape descriptor used purely to wait on this slot's copy
            # (all copies move one (1, V) row, so any (1, V) refs work).
            pltpu.make_async_copy(
                table_ref.at[pl.ds(0, 1), :],
                out_ref.at[pl.ds(0, 1), :],
                sems.at[slot],
            ).wait()

        # Prime: put n_slots row copies in flight (static slot indices).
        for j in range(n_slots):
            issue(j, ids_ref[base + j])

        # Steady state: wait on copy j, immediately issue copy j + n_slots.
        if tn > n_slots:

            @pl.loop(0, tn - n_slots)
            def _(j):
                # Read the next token id from SMEM *before* the DMA wait
                # (a wait breaks SMEM store->load forwarding).
                tok = ids_ref[base + j + n_slots]
                wait_slot(j % n_slots)
                issue(j + n_slots, tok)

        # Drain the last n_slots copies (static slot indices).
        for j in range(tn - n_slots, tn):
            wait_slot(j % n_slots)

    return kernel


def bigram_forward(x_ids, table, *, block_tokens=256, dma_slots=8):
    """x_ids: (B, T) int token ids; table: (V, V) float32. Returns (B, T, V)."""
    B, T = x_ids.shape
    v_rows, V = table.shape
    N = B * T

    # Row-block size: multiple of 8 (sublane), capped so the double-buffered
    # output block stays comfortably inside scoped VMEM on every generation.
    tn = min(block_tokens, _round_up(N, 8))
    n_pad = _round_up(N, tn)
    n_slots = max(1, min(dma_slots, tn))

    ids = x_ids.reshape(N).astype(jnp.int32)
    ids = jnp.clip(ids, 0, v_rows - 1)          # never an OOB DMA source offset
    ids = jnp.pad(ids, (0, n_pad - N))          # pad rows gather row 0; sliced off

    out_flat = pl.pallas_call(
        _make_gather_kernel(tn, n_slots),
        out_shape=jax.ShapeDtypeStruct((n_pad, V), table.dtype),
        grid_spec=pltpu.PrefetchScalarGridSpec(
            num_scalar_prefetch=1,
            grid=(n_pad // tn,),
            in_specs=[pl.BlockSpec(memory_space=pl.ANY)],   # table stays in HBM
            out_specs=pl.BlockSpec((tn, V), lambda i, ids_ref: (i, 0)),
            scratch_shapes=[pltpu.SemaphoreType.DMA((n_slots,))],
        ),
        compiler_params=pltpu.CompilerParams(
            # Row blocks are independent: shard across TCs on v7x megacore.
            dimension_semantics=("parallel",),
            vmem_limit_bytes=48 * 1024 * 1024,
        ),
    )(ids, table)

    return out_flat[:N].reshape(B, T, V)


if __name__ == "__main__":
    # Deterministic parameter init (matches nn.Embedding(vocab_size, vocab_size)).
    key = jax.random.PRNGKey(0)
    k_table, k_ids = jax.random.split(key)
    table = jax.random.normal(k_table, (VOCAB_SIZE, VOCAB_SIZE), dtype=jnp.float32)

    # Small input consistent with the forward: batch=2, seq=8 token ids.
    B, T = 2, 8
    x_ids = jax.random.randint(k_ids, (B, T), 0, VOCAB_SIZE, dtype=jnp.int32)

    out = bigram_forward(x_ids, table)
    out = jax.block_until_ready(out)

    # Reference check against plain JAX gather.
    ref = jnp.take(table, x_ids.reshape(-1), axis=0).reshape(B, T, VOCAB_SIZE)
    assert out.shape == (B, T, VOCAB_SIZE)
    assert jnp.allclose(out, ref), "Pallas embedding gather mismatch"

    print("KERNEL_OK")
</pallas_src>

<mosaic_0001>
module attributes {stable_mosaic.version = 11 : i64} {
  func.func @kernel(%arg0: i32, %arg1: memref<16xi32, #tpu.memory_space<smem>>, %arg2: memref<5000x5000xf32, #tpu.memory_space<any>>, %arg3: memref<16x5000xf32, #tpu.memory_space<vmem>>, %arg4: memref<8x!tpu.dma_semaphore, #tpu.memory_space<semaphore_mem>>) attributes {dimension_semantics = [#tpu.dimension_semantics<parallel>], iteration_bounds = array<i64: 1>, scalar_prefetch = 1 : i64, scratch_operands = 1 : i64, tpu.core_type = #tpu.core_type<tc>, window_params = [{}, {transform_indices = @transform_1, window_bounds = array<i64: 16, 5000>}]} {
    %c16_i32 = arith.constant 16 : i32
    %0 = arith.muli %arg0, %c16_i32 : i32
    %c0_i32 = arith.constant 0 : i32
    %1 = arith.addi %0, %c0_i32 : i32
    %2 = arith.index_cast %1 : i32 to index
    %3 = memref.load %arg1[%2] : memref<16xi32, #tpu.memory_space<smem>>
    %c0_i32_0 = arith.constant 0 : i32
    %c0_i32_1 = arith.constant 0 : i32
    %4 = tpu.memref_slice %arg2[%3, %c0_i32_1] : memref<5000x5000xf32, #tpu.memory_space<any>> -> memref<1x5000xf32, #tpu.memory_space<any>>
    %c0_i32_2 = arith.constant 0 : i32
    %c0_i32_3 = arith.constant 0 : i32
    %5 = tpu.memref_slice %arg3[%c0_i32_2, %c0_i32_3] : memref<16x5000xf32, #tpu.memory_space<vmem>> -> memref<1x5000xf32, #tpu.memory_space<vmem>>
    %6 = tpu.memref_slice %arg4[%c0_i32_0] : memref<8x!tpu.dma_semaphore, #tpu.memory_space<semaphore_mem>> -> memref<1x!tpu.dma_semaphore, #tpu.memory_space<semaphore_mem>>
    %7 = tpu.memref_squeeze %6 : memref<1x!tpu.dma_semaphore, #tpu.memory_space<semaphore_mem>> -> memref<!tpu.dma_semaphore, #tpu.memory_space<semaphore_mem>>
    tpu.enqueue_dma source(%4 : memref<1x5000xf32, #tpu.memory_space<any>>) target(%5 : memref<1x5000xf32, #tpu.memory_space<vmem>>) target_semaphore(%7 : memref<!tpu.dma_semaphore, #tpu.memory_space<semaphore_mem>>)
    %c1_i32 = arith.constant 1 : i32
    %8 = arith.addi %0, %c1_i32 : i32
    %9 = arith.index_cast %8 : i32 to index
    %10 = memref.load %arg1[%9] : memref<16xi32, #tpu.memory_space<smem>>
    %c1_i32_4 = arith.constant 1 : i32
    %c0_i32_5 = arith.constant 0 : i32
    %11 = tpu.memref_slice %arg2[%10, %c0_i32_5] : memref<5000x5000xf32, #tpu.memory_space<any>> -> memref<1x5000xf32, #tpu.memory_space<any>>
    %c1_i32_6 = arith.constant 1 : i32
    %c0_i32_7 = arith.constant 0 : i32
    %12 = tpu.memref_slice %arg3[%c1_i32_6, %c0_i32_7] : memref<16x5000xf32, #tpu.memory_space<vmem>> -> memref<1x5000xf32, #tpu.memory_space<vmem>>
    %13 = tpu.memref_slice %arg4[%c1_i32_4] : memref<8x!tpu.dma_semaphore, #tpu.memory_space<semaphore_mem>> -> memref<1x!tpu.dma_semaphore, #tpu.memory_space<semaphore_mem>>
    %14 = tpu.memref_squeeze %13 : memref<1x!tpu.dma_semaphore, #tpu.memory_space<semaphore_mem>> -> memref<!tpu.dma_semaphore, #tpu.memory_space<semaphore_mem>>
    tpu.enqueue_dma source(%11 : memref<1x5000xf32, #tpu.memory_space<any>>) target(%12 : memref<1x5000xf32, #tpu.memory_space<vmem>>) target_semaphore(%14 : memref<!tpu.dma_semaphore, #tpu.memory_space<semaphore_mem>>)
    %c2_i32 = arith.constant 2 : i32
    %15 = arith.addi %0, %c2_i32 : i32
    %16 = arith.index_cast %15 : i32 to index
    %17 = memref.load %arg1[%16] : memref<16xi32, #tpu.memory_space<smem>>
    %c2_i32_8 = arith.constant 2 : i32
    %c0_i32_9 = arith.constant 0 : i32
    %18 = tpu.memref_slice %arg2[%17, %c0_i32_9] : memref<5000x5000xf32, #tpu.memory_space<any>> -> memref<1x5000xf32, #tpu.memory_space<any>>
    %c2_i32_10 = arith.constant 2 : i32
    %c0_i32_11 = arith.constant 0 : i32
    %19 = tpu.memref_slice %arg3[%c2_i32_10, %c0_i32_11] : memref<16x5000xf32, #tpu.memory_space<vmem>> -> memref<1x5000xf32, #tpu.memory_space<vmem>>
    %20 = tpu.memref_slice %arg4[%c2_i32_8] : memref<8x!tpu.dma_semaphore, #tpu.memory_space<semaphore_mem>> -> memref<1x!tpu.dma_semaphore, #tpu.memory_space<semaphore_mem>>
    %21 = tpu.memref_squeeze %20 : memref<1x!tpu.dma_semaphore, #tpu.memory_space<semaphore_mem>> -> memref<!tpu.dma_semaphore, #tpu.memory_space<semaphore_mem>>
    tpu.enqueue_dma source(%18 : memref<1x5000xf32, #tpu.memory_space<any>>) target(%19 : memref<1x5000xf32, #tpu.memory_space<vmem>>) target_semaphore(%21 : memref<!tpu.dma_semaphore, #tpu.memory_space<semaphore_mem>>)
    %c3_i32 = arith.constant 3 : i32
    %22 = arith.addi %0, %c3_i32 : i32
    %23 = arith.index_cast %22 : i32 to index
    %24 = memref.load %arg1[%23] : memref<16xi32, #tpu.memory_space<smem>>
    %c3_i32_12 = arith.constant 3 : i32
    %c0_i32_13 = arith.constant 0 : i32
    %25 = tpu.memref_slice %arg2[%24, %c0_i32_13] : memref<5000x5000xf32, #tpu.memory_space<any>> -> memref<1x5000xf32, #tpu.memory_space<any>>
    %c3_i32_14 = arith.constant 3 : i32
    %c0_i32_15 = arith.constant 0 : i32
    %26 = tpu.memref_slice %arg3[%c3_i32_14, %c0_i32_15] : memref<16x5000xf32, #tpu.memory_space<vmem>> -> memref<1x5000xf32, #tpu.memory_space<vmem>>
    %27 = tpu.memref_slice %arg4[%c3_i32_12] : memref<8x!tpu.dma_semaphore, #tpu.memory_space<semaphore_mem>> -> memref<1x!tpu.dma_semaphore, #tpu.memory_space<semaphore_mem>>
    %28 = tpu.memref_squeeze %27 : memref<1x!tpu.dma_semaphore, #tpu.memory_space<semaphore_mem>> -> memref<!tpu.dma_semaphore, #tpu.memory_space<semaphore_mem>>
    tpu.enqueue_dma source(%25 : memref<1x5000xf32, #tpu.memory_space<any>>) target(%26 : memref<1x5000xf32, #tpu.memory_space<vmem>>) target_semaphore(%28 : memref<!tpu.dma_semaphore, #tpu.memory_space<semaphore_mem>>)
    %c4_i32 = arith.constant 4 : i32
    %29 = arith.addi %0, %c4_i32 : i32
    %30 = arith.index_cast %29 : i32 to index
    %31 = memref.load %arg1[%30] : memref<16xi32, #tpu.memory_space<smem>>
    %c4_i32_16 = arith.constant 4 : i32
    %c0_i32_17 = arith.constant 0 : i32
    %32 = tpu.memref_slice %arg2[%31, %c0_i32_17] : memref<5000x5000xf32, #tpu.memory_space<any>> -> memref<1x5000xf32, #tpu.memory_space<any>>
    %c4_i32_18 = arith.constant 4 : i32
    %c0_i32_19 = arith.constant 0 : i32
    %33 = tpu.memref_slice %arg3[%c4_i32_18, %c0_i32_19] : memref<16x5000xf32, #tpu.memory_space<vmem>> -> memref<1x5000xf32, #tpu.memory_space<vmem>>
    %34 = tpu.memref_slice %arg4[%c4_i32_16] : memref<8x!tpu.dma_semaphore, #tpu.memory_space<semaphore_mem>> -> memref<1x!tpu.dma_semaphore, #tpu.memory_space<semaphore_mem>>
    %35 = tpu.memref_squeeze %34 : memref<1x!tpu.dma_semaphore, #tpu.memory_space<semaphore_mem>> -> memref<!tpu.dma_semaphore, #tpu.memory_space<semaphore_mem>>
    tpu.enqueue_dma source(%32 : memref<1x5000xf32, #tpu.memory_space<any>>) target(%33 : memref<1x5000xf32, #tpu.memory_space<vmem>>) target_semaphore(%35 : memref<!tpu.dma_semaphore, #tpu.memory_space<semaphore_mem>>)
    %c5_i32 = arith.constant 5 : i32
    %36 = arith.addi %0, %c5_i32 : i32
    %37 = arith.index_cast %36 : i32 to index
    %38 = memref.load %arg1[%37] : memref<16xi32, #tpu.memory_space<smem>>
    %c5_i32_20 = arith.constant 5 : i32
    %c0_i32_21 = arith.constant 0 : i32
    %39 = tpu.memref_slice %arg2[%38, %c0_i32_21] : memref<5000x5000xf32, #tpu.memory_space<any>> -> memref<1x5000xf32, #tpu.memory_space<any>>
    %c5_i32_22 = arith.constant 5 : i32
    %c0_i32_23 = arith.constant 0 : i32
    %40 = tpu.memref_slice %arg3[%c5_i32_22, %c0_i32_23] : memref<16x5000xf32, #tpu.memory_space<vmem>> -> memref<1x5000xf32, #tpu.memory_space<vmem>>
    %41 = tpu.memref_slice %arg4[%c5_i32_20] : memref<8x!tpu.dma_semaphore, #tpu.memory_space<semaphore_mem>> -> memref<1x!tpu.dma_semaphore, #tpu.memory_space<semaphore_mem>>
    %42 = tpu.memref_squeeze %41 : memref<1x!tpu.dma_semaphore, #tpu.memory_space<semaphore_mem>> -> memref<!tpu.dma_semaphore, #tpu.memory_space<semaphore_mem>>
    tpu.enqueue_dma source(%39 : memref<1x5000xf32, #tpu.memory_space<any>>) target(%40 : memref<1x5000xf32, #tpu.memory_space<vmem>>) target_semaphore(%42 : memref<!tpu.dma_semaphore, #tpu.memory_space<semaphore_mem>>)
    %c6_i32 = arith.constant 6 : i32
    %43 = arith.addi %0, %c6_i32 : i32
    %44 = arith.index_cast %43 : i32 to index
    %45 = memref.load %arg1[%44] : memref<16xi32, #tpu.memory_space<smem>>
    %c6_i32_24 = arith.constant 6 : i32
    %c0_i32_25 = arith.constant 0 : i32
    %46 = tpu.memref_slice %arg2[%45, %c0_i32_25] : memref<5000x5000xf32, #tpu.memory_space<any>> -> memref<1x5000xf32, #tpu.memory_space<any>>
    %c6_i32_26 = arith.constant 6 : i32
    %c0_i32_27 = arith.constant 0 : i32
    %47 = tpu.memref_slice %arg3[%c6_i32_26, %c0_i32_27] : memref<16x5000xf32, #tpu.memory_space<vmem>> -> memref<1x5000xf32, #tpu.memory_space<vmem>>
    %48 = tpu.memref_slice %arg4[%c6_i32_24] : memref<8x!tpu.dma_semaphore, #tpu.memory_space<semaphore_mem>> -> memref<1x!tpu.dma_semaphore, #tpu.memory_space<semaphore_mem>>
    %49 = tpu.memref_squeeze %48 : memref<1x!tpu.dma_semaphore, #tpu.memory_space<semaphore_mem>> -> memref<!tpu.dma_semaphore, #tpu.memory_space<semaphore_mem>>
    tpu.enqueue_dma source(%46 : memref<1x5000xf32, #tpu.memory_space<any>>) target(%47 : memref<1x5000xf32, #tpu.memory_space<vmem>>) target_semaphore(%49 : memref<!tpu.dma_semaphore, #tpu.memory_space<semaphore_mem>>)
    %c7_i32 = arith.constant 7 : i32
    %50 = arith.addi %0, %c7_i32 : i32
    %51 = arith.index_cast %50 : i32 to index
    %52 = memref.load %arg1[%51] : memref<16xi32, #tpu.memory_space<smem>>
    %c7_i32_28 = arith.constant 7 : i32
    %c0_i32_29 = arith.constant 0 : i32
    %53 = tpu.memref_slice %arg2[%52, %c0_i32_29] : memref<5000x5000xf32, #tpu.memory_space<any>> -> memref<1x5000xf32, #tpu.memory_space<any>>
    %c7_i32_30 = arith.constant 7 : i32
    %c0_i32_31 = arith.constant 0 : i32
    %54 = tpu.memref_slice %arg3[%c7_i32_30, %c0_i32_31] : memref<16x5000xf32, #tpu.memory_space<vmem>> -> memref<1x5000xf32, #tpu.memory_space<vmem>>
    %55 = tpu.memref_slice %arg4[%c7_i32_28] : memref<8x!tpu.dma_semaphore, #tpu.memory_space<semaphore_mem>> -> memref<1x!tpu.dma_semaphore, #tpu.memory_space<semaphore_mem>>
    %56 = tpu.memref_squeeze %55 : memref<1x!tpu.dma_semaphore, #tpu.memory_space<semaphore_mem>> -> memref<!tpu.dma_semaphore, #tpu.memory_space<semaphore_mem>>
    tpu.enqueue_dma source(%53 : memref<1x5000xf32, #tpu.memory_space<any>>) target(%54 : memref<1x5000xf32, #tpu.memory_space<vmem>>) target_semaphore(%56 : memref<!tpu.dma_semaphore, #tpu.memory_space<semaphore_mem>>)
    %c0_i32_32 = arith.constant 0 : i32
    %c8_i32 = arith.constant 8 : i32
    %57 = arith.addi %c0_i32_32, %c8_i32 : i32
    %c1_i32_33 = arith.constant 1 : i32
    scf.for %arg5 = %c0_i32_32 to %57 step %c1_i32_33  : i32 {
      %c1_i32_75 = arith.constant 1 : i32
      %90 = arith.muli %arg5, %c1_i32_75 : i32
      %c0_i32_76 = arith.constant 0 : i32
      %91 = arith.addi %c0_i32_76, %90 : i32
      %92 = arith.addi %0, %91 : i32
      %c8_i32_77 = arith.constant 8 : i32
      %93 = arith.addi %92, %c8_i32_77 : i32
      %94 = arith.index_cast %93 : i32 to index
      %95 = memref.load %arg1[%94] : memref<16xi32, #tpu.memory_space<smem>>
      %c8_i32_78 = arith.constant 8 : i32
      %c0_i32_79 = arith.constant 0 : i32
      %96 = arith.cmpi eq, %c8_i32_78, %c0_i32_79 : i32
      %c1_i32_80 = arith.constant 1 : i32
      %97 = arith.select %96, %c1_i32_80, %c8_i32_78 : i32
      %98 = arith.remsi %91, %97 : i32
      %c0_i32_81 = arith.constant 0 : i32
      %99 = arith.cmpi ne, %98, %c0_i32_81 : i32
      %c0_i32_82 = arith.constant 0 : i32
      %100 = arith.cmpi slt, %98, %c0_i32_82 : i32
      %c0_i32_83 = arith.constant 0 : i32
      %101 = arith.cmpi slt, %97, %c0_i32_83 : i32
      %102 = arith.xori %100, %101 : i1
      %103 = arith.andi %102, %99 : i1
      %104 = arith.addi %98, %97 : i32
      %105 = arith.select %103, %104, %98 : i32
      %c0_i32_84 = arith.constant 0 : i32
      %c0_i32_85 = arith.constant 0 : i32
      %106 = tpu.memref_slice %arg2[%c0_i32_84, %c0_i32_85] : memref<5000x5000xf32, #tpu.memory_space<any>> -> memref<1x5000xf32, #tpu.memory_space<any>>
      %c0_i32_86 = arith.constant 0 : i32
      %c0_i32_87 = arith.constant 0 : i32
      %107 = tpu.memref_slice %arg3[%c0_i32_86, %c0_i32_87] : memref<16x5000xf32, #tpu.memory_space<vmem>> -> memref<1x5000xf32, #tpu.memory_space<vmem>>
      %108 = tpu.memref_slice %arg4[%105] : memref<8x!tpu.dma_semaphore, #tpu.memory_space<semaphore_mem>> -> memref<1x!tpu.dma_semaphore, #tpu.memory_space<semaphore_mem>>
      %109 = tpu.memref_squeeze %108 : memref<1x!tpu.dma_semaphore, #tpu.memory_space<semaphore_mem>> -> memref<!tpu.dma_semaphore, #tpu.memory_space<semaphore_mem>>
      tpu.wait_dma2 semaphore(%109 : memref<!tpu.dma_semaphore, #tpu.memory_space<semaphore_mem>>) src(%106 : memref<1x5000xf32, #tpu.memory_space<any>>) dst(%107 : memref<1x5000xf32, #tpu.memory_space<vmem>>)
      %c8_i32_88 = arith.constant 8 : i32
      %110 = arith.addi %91, %c8_i32_88 : i32
      %c8_i32_89 = arith.constant 8 : i32
      %c0_i32_90 = arith.constant 0 : i32
      %111 = arith.cmpi eq, %c8_i32_89, %c0_i32_90 : i32
      %c1_i32_91 = arith.constant 1 : i32
      %112 = arith.select %111, %c1_i32_91, %c8_i32_89 : i32
      %113 = arith.remsi %110, %112 : i32
      %c0_i32_92 = arith.constant 0 : i32
      %114 = arith.cmpi ne, %113, %c0_i32_92 : i32
      %c0_i32_93 = arith.constant 0 : i32
      %115 = arith.cmpi slt, %113, %c0_i32_93 : i32
      %c0_i32_94 = arith.constant 0 : i32
      %116 = arith.cmpi slt, %112, %c0_i32_94 : i32
      %117 = arith.xori %115, %116 : i1
      %118 = arith.andi %117, %114 : i1
      %119 = arith.addi %113, %112 : i32
      %120 = arith.select %118, %119, %113 : i32
      %c0_i32_95 = arith.constant 0 : i32
      %121 = tpu.memref_slice %arg2[%95, %c0_i32_95] : memref<5000x5000xf32, #tpu.memory_space<any>> -> memref<1x5000xf32, #tpu.memory_space<any>>
      %c0_i32_96 = arith.constant 0 : i32
      %122 = tpu.memref_slice %arg3[%110, %c0_i32_96] : memref<16x5000xf32, #tpu.memory_space<vmem>> -> memref<1x5000xf32, #tpu.memory_space<vmem>>
      %123 = tpu.memref_slice %arg4[%120] : memref<8x!tpu.dma_semaphore, #tpu.memory_space<semaphore_mem>> -> memref<1x!tpu.dma_semaphore, #tpu.memory_space<semaphore_mem>>
      %124 = tpu.memref_squeeze %123 : memref<1x!tpu.dma_semaphore, #tpu.memory_space<semaphore_mem>> -> memref<!tpu.dma_semaphore, #tpu.memory_space<semaphore_mem>>
      tpu.enqueue_dma source(%121 : memref<1x5000xf32, #tpu.memory_space<any>>) target(%122 : memref<1x5000xf32, #tpu.memory_space<vmem>>) target_semaphore(%124 : memref<!tpu.dma_semaphore, #tpu.memory_space<semaphore_mem>>)
    }
    %c8_i32_34 = arith.constant 8 : i32
    %c0_i32_35 = arith.constant 0 : i32
    %c0_i32_36 = arith.constant 0 : i32
    %c0_i32_37 = arith.constant 0 : i32
    %58 = tpu.memref_slice %arg2[%c0_i32_36, %c0_i32_37] : memref<5000x5000xf32, #tpu.memory_space<any>> -> memref<1x5000xf32, #tpu.memory_space<any>>
    %c0_i32_38 = arith.constant 0 : i32
    %c0_i32_39 = arith.constant 0 : i32
    %59 = tpu.memref_slice %arg3[%c0_i32_38, %c0_i32_39] : memref<16x5000xf32, #tpu.memory_space<vmem>> -> memref<1x5000xf32, #tpu.memory_space<vmem>>
    %60 = tpu.memref_slice %arg4[%c0_i32_35] : memref<8x!tpu.dma_semaphore, #tpu.memory_space<semaphore_mem>> -> memref<1x!tpu.dma_semaphore, #tpu.memory_space<semaphore_mem>>
    %61 = tpu.memref_squeeze %60 : memref<1x!tpu.dma_semaphore, #tpu.memory_space<semaphore_mem>> -> memref<!tpu.dma_semaphore, #tpu.memory_space<semaphore_mem>>
    tpu.wait_dma2 semaphore(%61 : memref<!tpu.dma_semaphore, #tpu.memory_space<semaphore_mem>>) src(%58 : memref<1x5000xf32, #tpu.memory_space<any>>) dst(%59 : memref<1x5000xf32, #tpu.memory_space<vmem>>)
    %c1_i32_40 = arith.constant 1 : i32
    %c0_i32_41 = arith.constant 0 : i32
    %c0_i32_42 = arith.constant 0 : i32
    %62 = tpu.memref_slice %arg2[%c0_i32_41, %c0_i32_42] : memref<5000x5000xf32, #tpu.memory_space<any>> -> memref<1x5000xf32, #tpu.memory_space<any>>
    %c0_i32_43 = arith.constant 0 : i32
    %c0_i32_44 = arith.constant 0 : i32
    %63 = tpu.memref_slice %arg3[%c0_i32_43, %c0_i32_44] : memref<16x5000xf32, #tpu.memory_space<vmem>> -> memref<1x5000xf32, #tpu.memory_space<vmem>>
    %64 = tpu.memref_slice %arg4[%c1_i32_40] : memref<8x!tpu.dma_semaphore, #tpu.memory_space<semaphore_mem>> -> memref<1x!tpu.dma_semaphore, #tpu.memory_space<semaphore_mem>>
    %65 = tpu.memref_squeeze %64 : memref<1x!tpu.dma_semaphore, #tpu.memory_space<semaphore_mem>> -> memref<!tpu.dma_semaphore, #tpu.memory_space<semaphore_mem>>
    tpu.wait_dma2 semaphore(%65 : memref<!tpu.dma_semaphore, #tpu.memory_space<semaphore_mem>>) src(%62 : memref<1x5000xf32, #tpu.memory_space<any>>) dst(%63 : memref<1x5000xf32, #tpu.memory_space<vmem>>)
    %c2_i32_45 = arith.constant 2 : i32
    %c0_i32_46 = arith.constant 0 : i32
    %c0_i32_47 = arith.constant 0 : i32
    %66 = tpu.memref_slice %arg2[%c0_i32_46, %c0_i32_47] : memref<5000x5000xf32, #tpu.memory_space<any>> -> memref<1x5000xf32, #tpu.memory_space<any>>
    %c0_i32_48 = arith.constant 0 : i32
    %c0_i32_49 = arith.constant 0 : i32
    %67 = tpu.memref_slice %arg3[%c0_i32_48, %c0_i32_49] : memref<16x5000xf32, #tpu.memory_space<vmem>> -> memref<1x5000xf32, #tpu.memory_space<vmem>>
    %68 = tpu.memref_slice %arg4[%c2_i32_45] : memref<8x!tpu.dma_semaphore, #tpu.memory_space<semaphore_mem>> -> memref<1x!tpu.dma_semaphore, #tpu.memory_space<semaphore_mem>>
    %69 = tpu.memref_squeeze %68 : memref<1x!tpu.dma_semaphore, #tpu.memory_space<semaphore_mem>> -> memref<!tpu.dma_semaphore, #tpu.memory_space<semaphore_mem>>
    tpu.wait_dma2 semaphore(%69 : memref<!tpu.dma_semaphore, #tpu.memory_space<semaphore_mem>>) src(%66 : memref<1x5000xf32, #tpu.memory_space<any>>) dst(%67 : memref<1x5000xf32, #tpu.memory_space<vmem>>)
    %c3_i32_50 = arith.constant 3 : i32
    %c0_i32_51 = arith.constant 0 : i32
    %c0_i32_52 = arith.constant 0 : i32
    %70 = tpu.memref_slice %arg2[%c0_i32_51, %c0_i32_52] : memref<5000x5000xf32, #tpu.memory_space<any>> -> memref<1x5000xf32, #tpu.memory_space<any>>
    %c0_i32_53 = arith.constant 0 : i32
    %c0_i32_54 = arith.constant 0 : i32
    %71 = tpu.memref_slice %arg3[%c0_i32_53, %c0_i32_54] : memref<16x5000xf32, #tpu.memory_space<vmem>> -> memref<1x5000xf32, #tpu.memory_space<vmem>>
    %72 = tpu.memref_slice %arg4[%c3_i32_50] : memref<8x!tpu.dma_semaphore, #tpu.memory_space<semaphore_mem>> -> memref<1x!tpu.dma_semaphore, #tpu.memory_space<semaphore_mem>>
    %73 = tpu.memref_squeeze %72 : memref<1x!tpu.dma_semaphore, #tpu.memory_space<semaphore_mem>> -> memref<!tpu.dma_semaphore, #tpu.memory_space<semaphore_mem>>
    tpu.wait_dma2 semaphore(%73 : memref<!tpu.dma_semaphore, #tpu.memory_space<semaphore_mem>>) src(%70 : memref<1x5000xf32, #tpu.memory_space<any>>) dst(%71 : memref<1x5000xf32, #tpu.memory_space<vmem>>)
    %c4_i32_55 = arith.constant 4 : i32
    %c0_i32_56 = arith.constant 0 : i32
    %c0_i32_57 = arith.constant 0 : i32
    %74 = tpu.memref_slice %arg2[%c0_i32_56, %c0_i32_57] : memref<5000x5000xf32, #tpu.memory_space<any>> -> memref<1x5000xf32, #tpu.memory_space<any>>
    %c0_i32_58 = arith.constant 0 : i32
    %c0_i32_59 = arith.constant 0 : i32
    %75 = tpu.memref_slice %arg3[%c0_i32_58, %c0_i32_59] : memref<16x5000xf32, #tpu.memory_space<vmem>> -> memref<1x5000xf32, #tpu.memory_space<vmem>>
    %76 = tpu.memref_slice %arg4[%c4_i32_55] : memref<8x!tpu.dma_semaphore, #tpu.memory_space<semaphore_mem>> -> memref<1x!tpu.dma_semaphore, #tpu.memory_space<semaphore_mem>>
    %77 = tpu.memref_squeeze %76 : memref<1x!tpu.dma_semaphore, #tpu.memory_space<semaphore_mem>> -> memref<!tpu.dma_semaphore, #tpu.memory_space<semaphore_mem>>
    tpu.wait_dma2 semaphore(%77 : memref<!tpu.dma_semaphore, #tpu.memory_space<semaphore_mem>>) src(%74 : memref<1x5000xf32, #tpu.memory_space<any>>) dst(%75 : memref<1x5000xf32, #tpu.memory_space<vmem>>)
    %c5_i32_60 = arith.constant 5 : i32
    %c0_i32_61 = arith.constant 0 : i32
    %c0_i32_62 = arith.constant 0 : i32
    %78 = tpu.memref_slice %arg2[%c0_i32_61, %c0_i32_62] : memref<5000x5000xf32, #tpu.memory_space<any>> -> memref<1x5000xf32, #tpu.memory_space<any>>
    %c0_i32_63 = arith.constant 0 : i32
    %c0_i32_64 = arith.constant 0 : i32
    %79 = tpu.memref_slice %arg3[%c0_i32_63, %c0_i32_64] : memref<16x5000xf32, #tpu.memory_space<vmem>> -> memref<1x5000xf32, #tpu.memory_space<vmem>>
    %80 = tpu.memref_slice %arg4[%c5_i32_60] : memref<8x!tpu.dma_semaphore, #tpu.memory_space<semaphore_mem>> -> memref<1x!tpu.dma_semaphore, #tpu.memory_space<semaphore_mem>>
    %81 = tpu.memref_squeeze %80 : memref<1x!tpu.dma_semaphore, #tpu.memory_space<semaphore_mem>> -> memref<!tpu.dma_semaphore, #tpu.memory_space<semaphore_mem>>
    tpu.wait_dma2 semaphore(%81 : memref<!tpu.dma_semaphore, #tpu.memory_space<semaphore_mem>>) src(%78 : memref<1x5000xf32, #tpu.memory_space<any>>) dst(%79 : memref<1x5000xf32, #tpu.memory_space<vmem>>)
    %c6_i32_65 = arith.constant 6 : i32
    %c0_i32_66 = arith.constant 0 : i32
    %c0_i32_67 = arith.constant 0 : i32
    %82 = tpu.memref_slice %arg2[%c0_i32_66, %c0_i32_67] : memref<5000x5000xf32, #tpu.memory_space<any>> -> memref<1x5000xf32, #tpu.memory_space<any>>
    %c0_i32_68 = arith.constant 0 : i32
    %c0_i32_69 = arith.constant 0 : i32
    %83 = tpu.memref_slice %arg3[%c0_i32_68, %c0_i32_69] : memref<16x5000xf32, #tpu.memory_space<vmem>> -> memref<1x5000xf32, #tpu.memory_space<vmem>>
    %84 = tpu.memref_slice %arg4[%c6_i32_65] : memref<8x!tpu.dma_semaphore, #tpu.memory_space<semaphore_mem>> -> memref<1x!tpu.dma_semaphore, #tpu.memory_space<semaphore_mem>>
    %85 = tpu.memref_squeeze %84 : memref<1x!tpu.dma_semaphore, #tpu.memory_space<semaphore_mem>> -> memref<!tpu.dma_semaphore, #tpu.memory_space<semaphore_mem>>
    tpu.wait_dma2 semaphore(%85 : memref<!tpu.dma_semaphore, #tpu.memory_space<semaphore_mem>>) src(%82 : memref<1x5000xf32, #tpu.memory_space<any>>) dst(%83 : memref<1x5000xf32, #tpu.memory_space<vmem>>)
    %c7_i32_70 = arith.constant 7 : i32
    %c0_i32_71 = arith.constant 0 : i32
    %c0_i32_72 = arith.constant 0 : i32
    %86 = tpu.memref_slice %arg2[%c0_i32_71, %c0_i32_72] : memref<5000x5000xf32, #tpu.memory_space<any>> -> memref<1x5000xf32, #tpu.memory_space<any>>
    %c0_i32_73 = arith.constant 0 : i32
    %c0_i32_74 = arith.constant 0 : i32
    %87 = tpu.memref_slice %arg3[%c0_i32_73, %c0_i32_74] : memref<16x5000xf32, #tpu.memory_space<vmem>> -> memref<1x5000xf32, #tpu.memory_space<vmem>>
    %88 = tpu.memref_slice %arg4[%c7_i32_70] : memref<8x!tpu.dma_semaphore, #tpu.memory_space<semaphore_mem>> -> memref<1x!tpu.dma_semaphore, #tpu.memory_space<semaphore_mem>>
    %89 = tpu.memref_squeeze %88 : memref<1x!tpu.dma_semaphore, #tpu.memory_space<semaphore_mem>> -> memref<!tpu.dma_semaphore, #tpu.memory_space<semaphore_mem>>
    tpu.wait_dma2 semaphore(%89 : memref<!tpu.dma_semaphore, #tpu.memory_space<semaphore_mem>>) src(%86 : memref<1x5000xf32, #tpu.memory_space<any>>) dst(%87 : memref<1x5000xf32, #tpu.memory_space<vmem>>)
    return
  }
  func.func @transform_1(%arg0: i32, %arg1: memref<16xi32, #tpu.memory_space<smem>>) -> (i32, i32) {
    %c0_i32 = arith.constant 0 : i32
    %c0_i32_0 = arith.constant 0 : i32
    return %arg0, %c0_i32 : i32, i32
  }
}

</mosaic_0001>

<llo_original>
// kernel: tpu_custom_call.1
$region0: #{tpu_custom_call.1}
  #allocation0 [shape = 'u32[]', space=smem, size = 0x4, offset = 0x4, fixed_abs, tag = 'smem constant byte address 0x4 - core index']
  #allocation1 [shape = 'u32[72,128]{1,0:T(1,128)}', space=vmem, size = 0x9000, scoped, tag = 'internal scratch']
  #allocation2 [shape = 's32[8]{0}', space=sflag, size = 0x20, scoped, tag = 'scratch operand']
  #allocation3 [shape = 's32[1]{0}', space=sflag, size = 0x4, scoped, tag = 'scoped memory for tpu_custom_call.1']
  #allocation4 [shape = 'u8[512]{0}', space=smem, size = 0x200, scoped, tag = 'prefetched SMEM operand 0']
  #allocation7 [shape = 's32[]', space=sflag, size = 0x4, offset = 0, fixed_abs, tag = 'sflag constant byte address 0x0 - dummy sync flag']
  #allocation8 [shape = 's32[]', space=sflag, size = 0x4, offset = 0, fixed_abs, tag = 'sflag constant byte address 0x0 - dummy sync flag']
  #allocation9 [shape = 's32[]', space=sflag, size = 0x4, offset = 0, fixed_abs, tag = 'sflag constant byte address 0x0 - dummy sync flag']
  #allocation10 [shape = 's32[]', space=sflag, size = 0x4, offset = 0, fixed_abs, tag = 'sflag constant byte address 0x0 - dummy sync flag']
  #allocation11 [shape = 's32[]', space=sflag, size = 0x4, offset = 0, fixed_abs, tag = 'sflag constant byte address 0x0 - dummy sync flag']
  #allocation12 [shape = 's32[]', space=sflag, size = 0x4, offset = 0, fixed_abs, tag = 'sflag constant byte address 0x0 - dummy sync flag']
  #allocation13 [shape = 's32[]', space=sflag, size = 0x4, offset = 0, fixed_abs, tag = 'sflag constant byte address 0x0 - dummy sync flag']
  #allocation14 [shape = 's32[]', space=sflag, size = 0x4, offset = 0, fixed_abs, tag = 'sflag constant byte address 0x0 - dummy sync flag']
  #allocation15 [shape = 's32[]', space=sflag, size = 0x4, offset = 0, fixed_abs, tag = 'sflag constant byte address 0x0 - dummy sync flag']
  %s0 = inlined_call_operand.hbm [shape: s32[16], index: 0, kind: input, shape index: {}]
  %s1 = inlined_call_operand.hbm [shape: f32[5000,5000], index: 1, kind: input, shape index: {}]
  %s2 = inlined_call_operand.hbm [shape: f32[16,5000], index: 2, kind: output, shape index: {}]
  %s3 = sld [smem:[#allocation0]]
  $region17: #{tpu_custom_call.1} parent=0
    _
  %s5 = ssub.s32 1, %s3
  %s6 = scalar_select 0, %s5, %s3
  %s8 = sshll.u32 %s0, 4
  %s9 = int_to_ptr.hbm [resolvable:$true] %s8
  %11 = dma.hbm_to_smem %s9, 16, [#allocation4], [#allocation3]
  %13 = dma.done [#allocation3], 16
  %14 = sfence
  $region1: #{tpu_custom_call.1} parent=0
    #allocation5 [shape = 'u8[327680]{0}', space=vmem, size = 0x50000, scoped, tag = 'output window, operand 0, single buffered']
    #allocation6 [shape = 's32[1]{0}', space=sflag, size = 0x4, scoped, tag = 'scoped memory for tpu_custom_call.1']
    %15 = vsyncpa [#allocation6], 0
    %s16 = smul.u32 0, 16
    %s17 = sld [smem:[#allocation4 + %s16]]
    %s18 = sshrl.u32 %s17, 3
    %s19 = sand.u32 %s17, 7
    %s20 = smul.u32 %s18, 320
    %s21 = sadd.s32 %s19, %s20
    %s22 = scalar_lea.hbm %s1, %s21
    %s23 = sshll.u32 %s22, 4
    %s24 = int_to_ptr.hbm [resolvable:$true] %s23
    %s25 = sshll.u32 [#allocation5], 4
    %s26 = int_to_ptr.vmem [resolvable:$true] %s25
    %30 = dma.hbm_to_vmem [thread:$0]  %s24, 640, %s26, [#allocation2], 128, 128, 1
    %s31 = sadd.s32 %s16, 1
    %s32 = sld [smem:[#allocation4 + %s31]]
    %s33 = sshrl.u32 %s32, 3
    %s34 = sand.u32 %s32, 7
    %s35 = smul.u32 %s33, 320
    %s36 = sadd.s32 %s34, %s35
    %s37 = scalar_lea.hbm %s1, %s36
    %s38 = scalar_lea.vmem [#allocation5], 1
    %s39 = scalar_lea.sflag [#allocation2], 1
    %s40 = sshll.u32 %s37, 4
    %s41 = int_to_ptr.hbm [resolvable:$true] %s40
    %s42 = sshll.u32 %s38, 4
    %s43 = int_to_ptr.vmem [resolvable:$true] %s42
    %47 = dma.hbm_to_vmem [thread:$0]  %s41, 640, %s43, %s39, 128, 128, 1
    %s48 = sadd.s32 %s16, 2
    %s49 = sld [smem:[#allocation4 + %s48]]
    %s50 = sshrl.u32 %s49, 3
    %s51 = sand.u32 %s49, 7
    %s52 = smul.u32 %s50, 320
    %s53 = sadd.s32 %s51, %s52
    %s54 = scalar_lea.hbm %s1, %s53
    %s55 = scalar_lea.vmem [#allocation5], 2
    %s56 = scalar_lea.sflag [#allocation2], 2
    %s57 = sshll.u32 %s54, 4
    %s58 = int_to_ptr.hbm [resolvable:$true] %s57
    %s59 = sshll.u32 %s55, 4
    %s60 = int_to_ptr.vmem [resolvable:$true] %s59
    %64 = dma.hbm_to_vmem [thread:$0]  %s58, 640, %s60, %s56, 128, 128, 1
    %s65 = sadd.s32 %s16, 3
    %s66 = sld [smem:[#allocation4 + %s65]]
    %s67 = sshrl.u32 %s66, 3
    %s68 = sand.u32 %s66, 7
    %s69 = smul.u32 %s67, 320
    %s70 = sadd.s32 %s68, %s69
    %s71 = scalar_lea.hbm %s1, %s70
    %s72 = scalar_lea.vmem [#allocation5], 3
    %s73 = scalar_lea.sflag [#allocation2], 3
    %s74 = sshll.u32 %s71, 4
    %s75 = int_to_ptr.hbm [resolvable:$true] %s74
    %s76 = sshll.u32 %s72, 4
    %s77 = int_to_ptr.vmem [resolvable:$true] %s76
    %81 = dma.hbm_to_vmem [thread:$0]  %s75, 640, %s77, %s73, 128, 128, 1
    %s82 = sadd.s32 %s16, 4
    %s83 = sld [smem:[#allocation4 + %s82]]
    %s84 = sshrl.u32 %s83, 3
    %s85 = sand.u32 %s83, 7
    %s86 = smul.u32 %s84, 320
    %s87 = sadd.s32 %s85, %s86
    %s88 = scalar_lea.hbm %s1, %s87
    %s89 = scalar_lea.vmem [#allocation5], 4
    %s90 = scalar_lea.sflag [#allocation2], 4
    %s91 = sshll.u32 %s88, 4
    %s92 = int_to_ptr.hbm [resolvable:$true] %s91
    %s93 = sshll.u32 %s89, 4
    %s94 = int_to_ptr.vmem [resolvable:$true] %s93
    %98 = dma.hbm_to_vmem [thread:$0]  %s92, 640, %s94, %s90, 128, 128, 1
    %s99 = sadd.s32 %s16, 5
    %s100 = sld [smem:[#allocation4 + %s99]]
    %s101 = sshrl.u32 %s100, 3
    %s102 = sand.u32 %s100, 7
    %s103 = smul.u32 %s101, 320
    %s104 = sadd.s32 %s102, %s103
    %s105 = scalar_lea.hbm %s1, %s104
    %s106 = scalar_lea.vmem [#allocation5], 5
    %s107 = scalar_lea.sflag [#allocation2], 5
    %s108 = sshll.u32 %s105, 4
    %s109 = int_to_ptr.hbm [resolvable:$true] %s108
    %s110 = sshll.u32 %s106, 4
    %s111 = int_to_ptr.vmem [resolvable:$true] %s110
    %115 = dma.hbm_to_vmem [thread:$0]  %s109, 640, %s111, %s107, 128, 128, 1
    %s116 = sadd.s32 %s16, 6
    %s117 = sld [smem:[#allocation4 + %s116]]
    %s118 = sshrl.u32 %s117, 3
    %s119 = sand.u32 %s117, 7
    %s120 = smul.u32 %s118, 320
    %s121 = sadd.s32 %s119, %s120
    %s122 = scalar_lea.hbm %s1, %s121
    %s123 = scalar_lea.vmem [#allocation5], 6
    %s124 = scalar_lea.sflag [#allocation2], 6
    %s125 = sshll.u32 %s122, 4
    %s126 = int_to_ptr.hbm [resolvable:$true] %s125
    %s127 = sshll.u32 %s123, 4
    %s128 = int_to_ptr.vmem [resolvable:$true] %s127
    %132 = dma.hbm_to_vmem [thread:$0]  %s126, 640, %s128, %s124, 128, 128, 1
    %s133 = sadd.s32 %s16, 7
    %s134 = sld [smem:[#allocation4 + %s133]]
    %s135 = sshrl.u32 %s134, 3
    %s136 = sand.u32 %s134, 7
    %s137 = smul.u32 %s135, 320
    %s138 = sadd.s32 %s136, %s137
    %s139 = scalar_lea.hbm %s1, %s138
    %s140 = scalar_lea.vmem [#allocation5], 7
    %s141 = scalar_lea.sflag [#allocation2], 7
    %s142 = sshll.u32 %s139, 4
    %s143 = int_to_ptr.hbm [resolvable:$true] %s142
    %s144 = sshll.u32 %s140, 4
    %s145 = int_to_ptr.vmem [resolvable:$true] %s144
    %149 = dma.hbm_to_vmem [thread:$0]  %s143, 640, %s145, %s141, 128, 128, 1
    loop: start=0, step=1, limit=8
    $region2: #{tpu_custom_call.1} parent=1 // loop_pre_header
      _
    $region3: #{tpu_custom_call.1} parent=1 // loop_header
      %s151 = sphi 0, %s155
      %p152 = scmp.ge.s32.totalorder %s151, 8
    $region4: #{tpu_custom_call.1} parent=1 // loop_header_branch
      %154 = sbr.rel (%p152) target = $region8
    $region5: #{tpu_custom_call.1} parent=1 // loop_body
      %s156 = sadd.s32 %s16, %s151
      %s157 = sadd.s32 %s156, 8
      %s158 = sld [smem:[#allocation4 + %s157]]
      %p159 = scmp.lt.s32.totalorder %s151, 0
      %s160 = ssub.s32 0, %s151
      %s161 = scalar_select %p159, %s160, %s151
      %s162 = sand.u32 %s161, 7
      %s163 = ssub.s32 0, %s162
      %s164 = scalar_select %p159, %s163, %s162
      %p165 = scmp.ne.s32.totalorder %s164, 0
      %p166 = scmp.lt.s32.totalorder %s164, 0
      %p167 = pnand %p166, %p165
      %p168 = pneg %p167
      %s169 = sadd.s32 %s164, 8
      %s170 = scalar_select %p168, %s169, %s164
      %s171 = scalar_lea.sflag [#allocation2], %s170
      %s172 = smul.u32 1, 40
      %s173 = sshll.u32 %s172, 4
      %174 = dma.done %s171, %s173
      %s175 = sadd.s32 %s151, 8
      %p176 = scmp.lt.s32.totalorder %s175, 0
      %s177 = ssub.s32 0, %s175
      %s178 = scalar_select %p176, %s177, %s175
      %s179 = sand.u32 %s178, 7
      %s180 = ssub.s32 0, %s179
      %s181 = scalar_select %p176, %s180, %s179
      %p182 = scmp.ne.s32.totalorder %s181, 0
      %p183 = scmp.lt.s32.totalorder %s181, 0
      %p184 = pnand %p183, %p182
      %p185 = pneg %p184
      %s186 = sadd.s32 %s181, 8
      %s187 = scalar_select %p185, %s186, %s181
      %s188 = sshrl.u32 %s158, 3
      %s189 = sand.u32 %s158, 7
      %s190 = smul.u32 %s188, 320
      %s191 = sadd.s32 %s189, %s190
      %s192 = scalar_lea.hbm %s1, %s191
      %s193 = sshrl.u32 %s175, 3
      %s194 = sand.u32 %s175, 7
      %s195 = smul.u32 %s193, 320
      %s196 = sadd.s32 %s194, %s195
      %s197 = scalar_lea.vmem [#allocation5], %s196
      %s198 = scalar_lea.sflag [#allocation2], %s187
      %s199 = sshll.u32 %s192, 4
      %s200 = int_to_ptr.hbm [resolvable:$true] %s199
      %s201 = sshll.u32 %s197, 4
      %s202 = int_to_ptr.vmem [resolvable:$true] %s201
      %206 = dma.hbm_to_vmem [thread:$0]  %s200, 640, %s202, %s198, 128, 128, 1
    $region6: #{tpu_custom_call.1} parent=1 // loop_footer
      %s155 = sadd.s32 1, %s151
    $region7: #{tpu_custom_call.1} parent=1 // loop_footer_branch
      %150 = sbr.rel target = $region3
    $region8: #{tpu_custom_call.1} parent=1 // loop_exit
      _
    %s207 = smul.u32 1, 40
    %s208 = sshll.u32 %s207, 4
    %209 = dma.done [#allocation2], %s208
    %s210 = sshll.u32 %s207, 4
    %211 = dma.done %s39, %s210
    %s212 = sshll.u32 %s207, 4
    %213 = dma.done %s56, %s212
    %s214 = sshll.u32 %s207, 4
    %215 = dma.done %s73, %s214
    %s216 = sshll.u32 %s207, 4
    %217 = dma.done %s90, %s216
    %s218 = sshll.u32 %s207, 4
    %219 = dma.done %s107, %s218
    %s220 = sshll.u32 %s207, 4
    %221 = dma.done %s124, %s220
    %s222 = sshll.u32 %s207, 4
    %223 = dma.done %s141, %s222
    // Predicated region
    $region9: #{tpu_custom_call.1} parent=1 // pred_check
      _
    $region10: #{tpu_custom_call.1} parent=1 // pred_check_branch
      %225 = sbr.rel (0) target = $region12
    $region11: #{tpu_custom_call.1} parent=1 // pred_region
      %227 = vsyncadd [#allocation6], 0
      %s228 = sshll.u32 [#allocation5], 4
      %s229 = int_to_ptr.vmem [resolvable:$true] %s228
      %s230 = sshll.u32 %s2, 4
      %s231 = int_to_ptr.hbm [resolvable:$true] %s230
      %236 = dma.vmem_to_hbm [thread:$0]  %s229, 10240, %s231, [#allocation6], 5120, 5120, 320
    $region12: #{tpu_custom_call.1} parent=1 // pred_fallthru
      _
    // Predicated region
    $region13: #{tpu_custom_call.1} parent=1 // pred_check
      _
    $region14: #{tpu_custom_call.1} parent=1 // pred_check_branch
      %238 = sbr.rel (0) target = $region16
    $region15: #{tpu_custom_call.1} parent=1 // pred_region
      %240 = dma.done [#allocation6], 10240
    $region16: #{tpu_custom_call.1} parent=1 // pred_fallthru
      _
    %241 = vsyncpa [#allocation6], 1
  %242 = vsyncmov [#allocation2]
  %s243 = vpop.sfrf %242
  %p244 = scmp.eq.s32.totalorder %s243, 0
  %p245 = pneg %p244
  %247 = shalt.err (%p245)
  %s248 = scalar_lea.sflag [#allocation2], 1
  %249 = vsyncmov %s248
  %s250 = vpop.sfrf %249
  %p251 = scmp.eq.s32.totalorder %s250, 0
  %p252 = pneg %p251
  %254 = shalt.err (%p252)
  %s255 = scalar_lea.sflag [#allocation2], 2
  %256 = vsyncmov %s255
  %s257 = vpop.sfrf %256
  %p258 = scmp.eq.s32.totalorder %s257, 0
  %p259 = pneg %p258
  %261 = shalt.err (%p259)
  %s262 = scalar_lea.sflag [#allocation2], 3
  %263 = vsyncmov %s262
  %s264 = vpop.sfrf %263
  %p265 = scmp.eq.s32.totalorder %s264, 0
  %p266 = pneg %p265
  %268 = shalt.err (%p266)
  %s269 = scalar_lea.sflag [#allocation2], 4
  %270 = vsyncmov %s269
  %s271 = vpop.sfrf %270
  %p272 = scmp.eq.s32.totalorder %s271, 0
  %p273 = pneg %p272
  %275 = shalt.err (%p273)
  %s276 = scalar_lea.sflag [#allocation2], 5
  %277 = vsyncmov %s276
  %s278 = vpop.sfrf %277
  %p279 = scmp.eq.s32.totalorder %s278, 0
  %p280 = pneg %p279
  %282 = shalt.err (%p280)
  %s283 = scalar_lea.sflag [#allocation2], 6
  %284 = vsyncmov %s283
  %s285 = vpop.sfrf %284
  %p286 = scmp.eq.s32.totalorder %s285, 0
  %p287 = pneg %p286
  %289 = shalt.err (%p287)
  %s290 = scalar_lea.sflag [#allocation2], 7
  %291 = vsyncmov %s290
  %s292 = vpop.sfrf %291
  %p293 = scmp.eq.s32.totalorder %s292, 0
  %p294 = pneg %p293
  %296 = shalt.err (%p294)

</llo_original>
